<compile_context>
chip_gen: v7x
topology: tpu7x:2x2x1
jax: 0.10.0
libtpu: 0.0.40
codegen_flags: <defaults>
</compile_context>

<pallas_src>
import functools
import math

import jax
import jax.numpy as jnp
from jax.experimental import pallas as pl
from jax.experimental.pallas import tpu as pltpu


# ----------------------------------------------------------------------------
# Pallas kernel: fused 1x1 conv + pos-add + LayerNorm (maxpool done in prep).
# Internal layout: channels on sublanes, tokens on lanes.
# ----------------------------------------------------------------------------
def _fused_kernel(x_ref, w_ref, pos_ref, g_ref, b_ref, o_ref, *, token_major):
    pooled = x_ref[...]                                  # (Cin, tm)  (maybe bf16)
    cin = pooled.shape[0]
    pos = pos_ref[...].astype(jnp.float32)               # (Cout, tm), conv bias folded in

    if cin <= 8:
        # Degenerate contraction (K tiny): do it on the VPU as Cin broadcast
        # multiply-adds instead of pushing a near-empty MXU matmul.
        w_f = w_ref[...].astype(jnp.float32)             # (Cout, Cin)
        p_f = pooled.astype(jnp.float32)
        y = pos
        for c in range(cin):
            y = y + w_f[:, c:c + 1] * p_f[c:c + 1, :]
    else:
        y = jnp.dot(w_ref[...], pooled,
                    preferred_element_type=jnp.float32) + pos   # (Cout, tm) f32

    # LayerNorm over channels (axis 0), two-pass (reference form), biased, eps=1e-5.
    cout = y.shape[0]
    mean = jnp.sum(y, axis=0, keepdims=True) * (1.0 / cout)
    yc = y - mean
    var = jnp.sum(yc * yc, axis=0, keepdims=True) * (1.0 / cout)
    yn = yc * jax.lax.rsqrt(var + 1e-5) * g_ref[...] + b_ref[...]

    if token_major:
        # Cout is lane-sized: emit (tm, Cout) so the wrapper needs no final transpose.
        o_ref[...] = jnp.transpose(yn, (1, 0)).astype(o_ref.dtype)
    else:
        o_ref[...] = yn.astype(o_ref.dtype)


# ----------------------------------------------------------------------------
# Plain-JAX glue reproducing the metadata-driven parts of the module
# ----------------------------------------------------------------------------
def _get_vis_mask(b, img_meta):
    # NOTE: reference uses pad_shape[0] for BOTH h and w (only correct for square
    # pads); replicated verbatim from the PyTorch module — flag upstream.
    h = max(meta["pad_shape"][0] for meta in img_meta)
    w = max(meta["pad_shape"][0] for meta in img_meta)
    mask = jnp.zeros((b, 1, h, w), dtype=jnp.float32)
    groups = b // len(img_meta)
    for i, meta in enumerate(img_meta):
        imh, imw, _ = meta["img_shape"]
        mask = mask.at[i * groups:(i + 1) * groups, 0, :imh, :imw].set(1.0)
    return mask


def _interp_nearest(mask, size):
    # F.interpolate(mode='nearest'): src = floor(dst * in/out)
    B, C, H, W = mask.shape
    oh, ow = size
    iy = jnp.floor(jnp.arange(oh) * (H / oh)).astype(jnp.int32)
    ix = jnp.floor(jnp.arange(ow) * (W / ow)).astype(jnp.int32)
    return mask[:, :, iy[:, None], ix[None, :]]


def _position_encoding_sine(mask, out_channels):
    # mask: (b, h, w) float32 in {0, 1}
    b, h, w = mask.shape
    y_embed = jnp.cumsum(mask, axis=1)
    x_embed = jnp.cumsum(mask, axis=2)
    eps = 1e-6
    y_embed = y_embed / (y_embed[:, -1:, :] + eps) * 2 * math.pi
    x_embed = x_embed / (x_embed[:, :, -1:] + eps) * 2 * math.pi
    pos_feat_dim = out_channels // 2
    dim_t = jnp.arange(pos_feat_dim, dtype=jnp.float32)
    dim_t = 10000.0 ** (2.0 * (dim_t // 2) / pos_feat_dim)
    pos_x = x_embed[:, :, :, None] / dim_t
    pos_y = y_embed[:, :, :, None] / dim_t
    pos_x = jnp.stack((jnp.sin(pos_x[:, :, :, 0::2]),
                       jnp.cos(pos_x[:, :, :, 1::2])), axis=4).reshape(b, h, w, -1)
    pos_y = jnp.stack((jnp.sin(pos_y[:, :, :, 0::2]),
                       jnp.cos(pos_y[:, :, :, 1::2])), axis=4).reshape(b, h, w, -1)
    # NHWC; torch permutes to NCHW but later flattens back to (b, h*w, C), so
    # keeping NHWC here yields identical token ordering (b, r*w + c).
    return jnp.concatenate((pos_y, pos_x), axis=3)


# ----------------------------------------------------------------------------
# Tiling / budget helpers
# ----------------------------------------------------------------------------
def _round_up(x, m):
    return ((x + m - 1) // m) * m


def _default_vmem_budget():
    """Generation-aware VMEM budget: half the physical VMEM, capped at 64 MiB."""
    cap = None
    try:
        cap = getattr(pltpu.get_tpu_info(), "vmem_capacity_bytes", None)
    except Exception:
        cap = None
    if not cap:
        cap = 64 * 1024 * 1024          # conservative floor (v7x physical)
    return int(min(cap // 2, 64 * 1024 * 1024))


def _tensorcores_per_chip():
    try:
        kind = jax.devices()[0].device_kind.lower()
    except Exception:
        return 1
    return 2 if "v7" in kind else 1


def _pick_token_tile(tokens, cin, cout, in_bytes, out_bytes, tile_tokens, budget):
    """Lane-aligned token tile fitting a double-buffered VMEM budget."""
    tm = max(128, (int(tile_tokens) // 128) * 128)
    tm = min(tm, _round_up(tokens, 128))
    # Double-buffered constant blocks: conv weight (stream dtype) + LN gamma/beta.
    resident = 2 * in_bytes * cout * cin + 2 * 2 * 4 * cout

    def per_step(t):
        return (2 * in_bytes * (cin + cout) * t      # pooled + pos tiles (dbl-buffered)
                + 2 * out_bytes * cout * t           # output tile (dbl-buffered)
                + 4 * cout * t)                      # in-kernel f32 working tile

    while tm > 128 and per_step(tm) + resident > budget:
        tm = max(128, ((tm // 2) // 128) * 128)
    return tm


# ----------------------------------------------------------------------------
# Forward wrapper
# ----------------------------------------------------------------------------
def simple_vd_for_vqa_forward(imgs, img_meta, conv_w, conv_b, ln_g, ln_b, *,
                              stream_dtype=jnp.bfloat16, tile_tokens=512,
                              vmem_budget_bytes=None, min_grid_steps=None,
                              pos_tokens=None):
    img = imgs[-1]                                   # last feature map, NCHW
    B, Cin, H0, W0 = img.shape
    h, w = H0 // 2, W0 // 2
    Cout = int(conv_w.shape[0])
    tokens = B * h * w

    # --- prep: ONE fused pass over the input — transpose to channel-major and
    # reduce the 2x2 pool window, writing (Cin, tokens) in the stream dtype.
    img_t = jnp.transpose(img[:, :, :2 * h, :2 * w], (1, 0, 2, 3))      # (Cin,B,2h,2w)
    pooled = jnp.max(img_t.reshape(Cin, B, h, 2, w, 2), axis=(3, 5))
    pooled = pooled.reshape(Cin, tokens).astype(stream_dtype)

    # metadata-driven visual mask + sinusoidal positional encoding (plain-JAX glue)
    vis = _interp_nearest(_get_vis_mask(B, img_meta), (h, w))           # (B,1,h,w)
    if pos_tokens is None:
        # TODO(synk): when img_meta / pad shapes are static across steps, hoist this
        # out of the forward and pass it back in via `pos_tokens` (it only depends
        # on the mask); recomputing cumsum + sin/cos each call is wasted HBM/EUP work.
        pos = _position_encoding_sine(vis[:, 0, :, :], Cout)            # (B,h,w,Cout)
        pos_t = (pos.reshape(tokens, Cout).T
                 + conv_b.astype(jnp.float32)[:, None]).astype(stream_dtype)
    else:
        pos_t = pos_tokens.astype(stream_dtype)                         # (Cout, tokens)

    w2 = conv_w.reshape(Cout, Cin).astype(stream_dtype)                 # (Cout, Cin)
    g2 = ln_g.reshape(Cout, 1).astype(jnp.float32)
    b2 = ln_b.reshape(Cout, 1).astype(jnp.float32)

    # --- tiling: pick a lane-aligned token tile under the VMEM budget; last block
    # may be partial (masked) — no padding copies.
    in_bytes = jnp.dtype(stream_dtype).itemsize
    if vmem_budget_bytes is None:
        vmem_budget_bytes = _default_vmem_budget()
    tm = _pick_token_tile(tokens, Cin, Cout, in_bytes, 4, tile_tokens,
                          vmem_budget_bytes)
    if min_grid_steps is None:
        min_grid_steps = 8 if _tensorcores_per_chip() > 1 else 1
    while min_grid_steps > 1 and tm > 128 and pl.cdiv(tokens, tm) < min_grid_steps:
        tm = max(128, ((tm // 2) // 128) * 128)
    n_steps = pl.cdiv(tokens, tm)

    token_major = (Cout % 128 == 0)
    if token_major:
        out_shape = jax.ShapeDtypeStruct((tokens, Cout), jnp.float32)
        out_spec = pl.BlockSpec((tm, Cout), lambda i: (i, 0))
    else:
        out_shape = jax.ShapeDtypeStruct((Cout, tokens), jnp.float32)
        out_spec = pl.BlockSpec((Cout, tm), lambda i: (0, i))

    out = pl.pallas_call(
        functools.partial(_fused_kernel, token_major=token_major),
        out_shape=out_shape,
        grid=(n_steps,),
        in_specs=[
            pl.BlockSpec((Cin, tm), lambda i: (0, i)),       # pooled input
            pl.BlockSpec((Cout, Cin), lambda i: (0, 0)),     # 1x1 conv weight
            pl.BlockSpec((Cout, tm), lambda i: (0, i)),      # pos (+ conv bias)
            pl.BlockSpec((Cout, 1), lambda i: (0, 0)),       # LN gamma
            pl.BlockSpec((Cout, 1), lambda i: (0, 0)),       # LN beta
        ],
        out_specs=out_spec,
        compiler_params=pltpu.CompilerParams(
            dimension_semantics=("parallel",),
            vmem_limit_bytes=int(vmem_budget_bytes)),
    )(pooled, w2, pos_t, g2, b2)

    if token_major:
        xq = out.reshape(B, h * w, Cout)                     # no transpose pass
    else:
        xq = jnp.transpose(out.reshape(Cout, B, h * w), (1, 2, 0))
    # TODO(synk): PyTorch returns int64 (.long()); JAX x64 is disabled -> int32.
    visual_mask = vis.reshape(B, h * w).astype(jnp.int32)
    return xq, visual_mask


# ----------------------------------------------------------------------------
# Pure-JAX reference (for correctness check only)
# ----------------------------------------------------------------------------
def _reference(img, img_meta, conv_w, conv_b, ln_g, ln_b):
    B, Cin, H0, W0 = img.shape
    h, w = H0 // 2, W0 // 2
    Cout = conv_w.shape[0]
    x = img[:, :, :2 * h, :2 * w].reshape(B, Cin, h, 2, w, 2).max(axis=(3, 5))
    xq = jnp.einsum("bchw,oc->bohw", x, conv_w.reshape(Cout, Cin),
                    precision=jax.lax.Precision.HIGHEST) \
        + conv_b[None, :, None, None]
    vis = _interp_nearest(_get_vis_mask(B, img_meta), (h, w))
    pos = _position_encoding_sine(vis[:, 0, :, :], Cout)
    y = jnp.transpose(xq, (0, 2, 3, 1)) + pos
    y = y.reshape(B, h * w, Cout)
    mean = y.mean(-1, keepdims=True)
    var = ((y - mean) ** 2).mean(-1, keepdims=True)
    y = (y - mean) / jnp.sqrt(var + 1e-5) * ln_g + ln_b
    return y, vis.reshape(B, h * w).astype(jnp.int32)


if __name__ == "__main__":
    base_key = jax.random.PRNGKey(0)

    def run_case(case_idx, B, Cin, Cout, H0, W0, stream_dtype, atol, rtol):
        k_img, k_w, k_b = jax.random.split(jax.random.fold_in(base_key, case_idx), 3)
        img = jax.random.normal(k_img, (B, Cin, H0, W0), dtype=jnp.float32)
        conv_w = jax.random.normal(k_w, (Cout, Cin, 1, 1), dtype=jnp.float32) \
            * math.sqrt(2.0 / Cin)
        conv_b = jax.random.normal(k_b, (Cout,), dtype=jnp.float32) * 0.01
        ln_g = jnp.ones((Cout,), jnp.float32)
        ln_b = jnp.zeros((Cout,), jnp.float32)
        img_meta = [
            {"pad_shape": (H0, W0, 3), "img_shape": (H0 - 2, W0 - 4, 3)},
            {"pad_shape": (H0, W0, 3), "img_shape": (H0, W0, 3)},
        ]

        xq, vmask = simple_vd_for_vqa_forward(
            [img], img_meta, conv_w, conv_b, ln_g, ln_b, stream_dtype=stream_dtype)
        xq = jax.block_until_ready(xq)
        vmask = jax.block_until_ready(vmask)

        xq_ref, vmask_ref = _reference(img, img_meta, conv_w, conv_b, ln_g, ln_b)
        assert xq.shape == (B, (H0 // 2) * (W0 // 2), Cout)
        assert vmask.shape == (B, (H0 // 2) * (W0 // 2))
        err = float(jnp.max(jnp.abs(xq - xq_ref)))
        assert jnp.allclose(xq, xq_ref, atol=atol, rtol=rtol), f"max |err| = {err}"
        assert jnp.array_equal(vmask, vmask_ref)

    # 1) small-Cin VPU path, channel-major output, f32 streams (strict check)
    run_case(0, 2, 4, 32, 16, 16, jnp.float32, 1e-3, 1e-3)
    # 2) MXU path, lane-sized Cout -> token-major output, f32 streams
    run_case(1, 2, 256, 128, 16, 16, jnp.float32, 3e-2, 3e-2)
    # 3) same config with bf16 input/pos streams (halved HBM traffic)
    run_case(2, 2, 256, 128, 16, 16, jnp.bfloat16, 1e-1, 1e-1)

    print("KERNEL_OK")
</pallas_src>

<mosaic_0001>
module attributes {stable_mosaic.version = 11 : i64} {
  func.func @_fused_kernel(%arg0: i32, %arg1: memref<4x128xf32, #tpu.memory_space<vmem>>, %arg2: memref<32x4xf32, #tpu.memory_space<vmem>>, %arg3: memref<32x128xf32, #tpu.memory_space<vmem>>, %arg4: memref<32x1xf32, #tpu.memory_space<vmem>>, %arg5: memref<32x1xf32, #tpu.memory_space<vmem>>, %arg6: memref<32x128xf32, #tpu.memory_space<vmem>>) attributes {dimension_semantics = [#tpu.dimension_semantics<parallel>], iteration_bounds = array<i64: 1>, scalar_prefetch = 0 : i64, scratch_operands = 0 : i64, tpu.core_type = #tpu.core_type<tc>, window_params = [{transform_indices = @transform_0, window_bounds = array<i64: 4, 128>}, {pipeline_mode = #tpu.pipeline_mode<synchronous>, transform_indices = @transform_1, window_bounds = array<i64: 32, 4>}, {transform_indices = @transform_2, window_bounds = array<i64: 32, 128>}, {pipeline_mode = #tpu.pipeline_mode<synchronous>, transform_indices = @transform_3, window_bounds = array<i64: 32, 1>}, {pipeline_mode = #tpu.pipeline_mode<synchronous>, transform_indices = @transform_4, window_bounds = array<i64: 32, 1>}, {transform_indices = @transform_5, window_bounds = array<i64: 32, 128>}]} {
    %c0 = arith.constant 0 : index
    %c0_0 = arith.constant 0 : index
    %0 = vector.load %arg1[%c0, %c0_0] : memref<4x128xf32, #tpu.memory_space<vmem>>, vector<4x128xf32>
    %c0_1 = arith.constant 0 : index
    %c0_2 = arith.constant 0 : index
    %1 = vector.load %arg3[%c0_1, %c0_2] : memref<32x128xf32, #tpu.memory_space<vmem>>, vector<32x128xf32>
    %c0_3 = arith.constant 0 : index
    %c0_4 = arith.constant 0 : index
    %2 = vector.load %arg2[%c0_3, %c0_4] : memref<32x4xf32, #tpu.memory_space<vmem>>, vector<32x4xf32>
    %3 = vector.extract_strided_slice %2 {offsets = [0, 0], sizes = [32, 1], strides = [1, 1]} : vector<32x4xf32> to vector<32x1xf32>
    %4 = vector.extract_strided_slice %0 {offsets = [0, 0], sizes = [1, 128], strides = [1, 1]} : vector<4x128xf32> to vector<1x128xf32>
    %5 = vector.broadcast %3 : vector<32x1xf32> to vector<32x128xf32>
    %6 = vector.broadcast %4 : vector<1x128xf32> to vector<32x128xf32>
    %7 = arith.mulf %5, %6 : vector<32x128xf32>
    %8 = arith.addf %1, %7 : vector<32x128xf32>
    %9 = vector.extract_strided_slice %2 {offsets = [0, 1], sizes = [32, 1], strides = [1, 1]} : vector<32x4xf32> to vector<32x1xf32>
    %10 = vector.extract_strided_slice %0 {offsets = [1, 0], sizes = [1, 128], strides = [1, 1]} : vector<4x128xf32> to vector<1x128xf32>
    %11 = vector.broadcast %9 : vector<32x1xf32> to vector<32x128xf32>
    %12 = vector.broadcast %10 : vector<1x128xf32> to vector<32x128xf32>
    %13 = arith.mulf %11, %12 : vector<32x128xf32>
    %14 = arith.addf %8, %13 : vector<32x128xf32>
    %15 = vector.extract_strided_slice %2 {offsets = [0, 2], sizes = [32, 1], strides = [1, 1]} : vector<32x4xf32> to vector<32x1xf32>
    %16 = vector.extract_strided_slice %0 {offsets = [2, 0], sizes = [1, 128], strides = [1, 1]} : vector<4x128xf32> to vector<1x128xf32>
    %17 = vector.broadcast %15 : vector<32x1xf32> to vector<32x128xf32>
    %18 = vector.broadcast %16 : vector<1x128xf32> to vector<32x128xf32>
    %19 = arith.mulf %17, %18 : vector<32x128xf32>
    %20 = arith.addf %14, %19 : vector<32x128xf32>
    %21 = vector.extract_strided_slice %2 {offsets = [0, 3], sizes = [32, 1], strides = [1, 1]} : vector<32x4xf32> to vector<32x1xf32>
    %22 = vector.extract_strided_slice %0 {offsets = [3, 0], sizes = [1, 128], strides = [1, 1]} : vector<4x128xf32> to vector<1x128xf32>
    %23 = vector.broadcast %21 : vector<32x1xf32> to vector<32x128xf32>
    %24 = vector.broadcast %22 : vector<1x128xf32> to vector<32x128xf32>
    %25 = arith.mulf %23, %24 : vector<32x128xf32>
    %26 = arith.addf %20, %25 : vector<32x128xf32>
    %cst = arith.constant dense<0.000000e+00> : vector<128xf32>
    %27 = vector.multi_reduction <add>, %26, %cst [0] : vector<32x128xf32> to vector<128xf32>
    %28 = vector.shape_cast %27 : vector<128xf32> to vector<1x128xf32>
    %cst_5 = arith.constant 3.125000e-02 : f32
    %29 = vector.broadcast %cst_5 : f32 to vector<1x128xf32>
    %30 = arith.mulf %28, %29 : vector<1x128xf32>
    %31 = vector.broadcast %30 : vector<1x128xf32> to vector<32x128xf32>
    %32 = arith.subf %26, %31 : vector<32x128xf32>
    %33 = arith.mulf %32, %32 : vector<32x128xf32>
    %cst_6 = arith.constant dense<0.000000e+00> : vector<128xf32>
    %34 = vector.multi_reduction <add>, %33, %cst_6 [0] : vector<32x128xf32> to vector<128xf32>
    %35 = vector.shape_cast %34 : vector<128xf32> to vector<1x128xf32>
    %cst_7 = arith.constant 3.125000e-02 : f32
    %36 = vector.broadcast %cst_7 : f32 to vector<1x128xf32>
    %37 = arith.mulf %35, %36 : vector<1x128xf32>
    %cst_8 = arith.constant 9.99999974E-6 : f32
    %38 = vector.broadcast %cst_8 : f32 to vector<1x128xf32>
    %39 = arith.addf %37, %38 : vector<1x128xf32>
    %40 = math.rsqrt %39 : vector<1x128xf32>
    %41 = vector.broadcast %40 : vector<1x128xf32> to vector<32x128xf32>
    %42 = arith.mulf %32, %41 : vector<32x128xf32>
    %c0_9 = arith.constant 0 : index
    %c0_10 = arith.constant 0 : index
    %43 = vector.load %arg4[%c0_9, %c0_10] : memref<32x1xf32, #tpu.memory_space<vmem>>, vector<32x1xf32>
    %44 = vector.broadcast %43 : vector<32x1xf32> to vector<32x128xf32>
    %45 = arith.mulf %42, %44 : vector<32x128xf32>
    %c0_11 = arith.constant 0 : index
    %c0_12 = arith.constant 0 : index
    %46 = vector.load %arg5[%c0_11, %c0_12] : memref<32x1xf32, #tpu.memory_space<vmem>>, vector<32x1xf32>
    %47 = vector.broadcast %46 : vector<32x1xf32> to vector<32x128xf32>
    %48 = arith.addf %45, %47 : vector<32x128xf32>
    %c0_13 = arith.constant 0 : index
    %c0_14 = arith.constant 0 : index
    %49 = vector.load %arg6[%c0_13, %c0_14] : memref<32x128xf32, #tpu.memory_space<vmem>>, vector<32x128xf32>
    tpu.vector_store %arg6[%c0_13, %c0_14], %48 {strides = array<i32>} : memref<32x128xf32, #tpu.memory_space<vmem>>, vector<32x128xf32>,
    return
  }
  func.func @transform_0(%arg0: i32) -> (i32, i32) {
    %c0_i32 = arith.constant 0 : i32
    %c0_i32_0 = arith.constant 0 : i32
    return %c0_i32, %arg0 : i32, i32
  }
  func.func @transform_1(%arg0: i32) -> (i32, i32) {
    %c0_i32 = arith.constant 0 : i32
    %c0_i32_0 = arith.constant 0 : i32
    %c0_i32_1 = arith.constant 0 : i32
    return %c0_i32, %c0_i32_0 : i32, i32
  }
  func.func @transform_2(%arg0: i32) -> (i32, i32) {
    %c0_i32 = arith.constant 0 : i32
    %c0_i32_0 = arith.constant 0 : i32
    return %c0_i32, %arg0 : i32, i32
  }
  func.func @transform_3(%arg0: i32) -> (i32, i32) {
    %c0_i32 = arith.constant 0 : i32
    %c0_i32_0 = arith.constant 0 : i32
    %c0_i32_1 = arith.constant 0 : i32
    return %c0_i32, %c0_i32_0 : i32, i32
  }
  func.func @transform_4(%arg0: i32) -> (i32, i32) {
    %c0_i32 = arith.constant 0 : i32
    %c0_i32_0 = arith.constant 0 : i32
    %c0_i32_1 = arith.constant 0 : i32
    return %c0_i32, %c0_i32_0 : i32, i32
  }
  func.func @transform_5(%arg0: i32) -> (i32, i32) {
    %c0_i32 = arith.constant 0 : i32
    %c0_i32_0 = arith.constant 0 : i32
    return %c0_i32, %arg0 : i32, i32
  }
}

</mosaic_0001>

<llo_original>
// kernel: tpu_custom_call.1
$region0: #{tpu_custom_call.1}
  #allocation0 [shape = 'u32[]', space=smem, size = 0x4, offset = 0x4, fixed_abs, tag = 'smem constant byte address 0x4 - core index']
  #allocation1 [shape = 'u32[144,128]{1,0:T(1,128)}', space=vmem, size = 0x12000, scoped, tag = 'internal scratch']
  %s0 = inlined_call_operand.vmem [shape: f32[4,128], index: 0, kind: input, shape index: {}]
  %s1 = inlined_call_operand.vmem [shape: f32[32,4], index: 1, kind: input, shape index: {}]
  %s2 = inlined_call_operand.vmem [shape: f32[32,128], index: 2, kind: input, shape index: {}]
  %s3 = inlined_call_operand.vmem [shape: f32[32,1], index: 3, kind: input, shape index: {}]
  %s4 = inlined_call_operand.vmem [shape: f32[32,1], index: 4, kind: input, shape index: {}]
  %s5 = inlined_call_operand.hbm [shape: f32[32,128], index: 5, kind: output, shape index: {}]
  %s6 = sld [smem:[#allocation0]]
  $region30: #{tpu_custom_call.1} parent=0
    _
  %s8 = ssub.s32 1, %s6
  %s9 = scalar_select 0, %s8, %s6
  $region1: #{tpu_custom_call.1} parent=0
    #allocation2 [shape = 'u8[16384]{0}', space=vmem, size = 0x4000, scoped, tag = 'output window, operand 0, single buffered']
    #allocation3 [shape = 's32[1]{0}', space=sflag, size = 0x4, scoped, tag = 'scoped memory for tpu_custom_call.1']
    %10 = vsyncpa [#allocation3], 0
    // Predicated region
    $region2: #{tpu_custom_call.1} parent=1 // pred_check
      _
    $region3: #{tpu_custom_call.1} parent=1 // pred_check_branch
      %12 = sbr.rel (0) target = $region5
    $region4: #{tpu_custom_call.1} parent=1 // pred_region
      _
    $region5: #{tpu_custom_call.1} parent=1 // pred_fallthru
      _
    // Predicated region
    $region6: #{tpu_custom_call.1} parent=1 // pred_check
      _
    $region7: #{tpu_custom_call.1} parent=1 // pred_check_branch
      %14 = sbr.rel (0) target = $region9
    $region8: #{tpu_custom_call.1} parent=1 // pred_region
      _
    $region9: #{tpu_custom_call.1} parent=1 // pred_fallthru
      _
    // Predicated region
    $region10: #{tpu_custom_call.1} parent=1 // pred_check
      _
    $region11: #{tpu_custom_call.1} parent=1 // pred_check_branch
      %16 = sbr.rel (0) target = $region13
    $region12: #{tpu_custom_call.1} parent=1 // pred_region
      _
    $region13: #{tpu_custom_call.1} parent=1 // pred_fallthru
      _
    // Predicated region
    $region14: #{tpu_custom_call.1} parent=1 // pred_check
      _
    $region15: #{tpu_custom_call.1} parent=1 // pred_check_branch
      %18 = sbr.rel (0) target = $region17
    $region16: #{tpu_custom_call.1} parent=1 // pred_region
      _
    $region17: #{tpu_custom_call.1} parent=1 // pred_fallthru
      _
    // Predicated region
    $region18: #{tpu_custom_call.1} parent=1 // pred_check
      _
    $region19: #{tpu_custom_call.1} parent=1 // pred_check_branch
      %20 = sbr.rel (0) target = $region21
    $region20: #{tpu_custom_call.1} parent=1 // pred_region
      _
    $region21: #{tpu_custom_call.1} parent=1 // pred_fallthru
      _
    %v21 = vld [vmem:[%s0] sm:$0xf]
    %v22 = vld [vmem:[%s2] sm:$0xff]
    %v23 = vld [vmem:[%s2 + $0x8] sm:$0xff]
    %v24 = vld [vmem:[%s2 + $0x10] sm:$0xff]
    %v25 = vld [vmem:[%s2 + $0x18] sm:$0xff]
    %v26 = vld [vmem:[%s1] sm:$0xff]
    %v27 = vld [vmem:[%s1 + $0x8] sm:$0xff]
    %v28 = vld [vmem:[%s1 + $0x10] sm:$0xff]
    %v29 = vld [vmem:[%s1 + $0x18] sm:$0xff]
    %31 = vset.pattern.permute.xlu0 0
    %32 = vperm.xlu0 %31, %v26
    %v33 = vpop.permute.xlu0 %32
    %36 = vset.pattern.permute.xlu0 0
    %37 = vperm.xlu0 %36, %v27
    %v38 = vpop.permute.xlu0 %37
    %41 = vset.pattern.permute.xlu0 0
    %42 = vperm.xlu0 %41, %v28
    %v43 = vpop.permute.xlu0 %42
    %46 = vset.pattern.permute.xlu0 0
    %47 = vperm.xlu0 %46, %v29
    %v48 = vpop.permute.xlu0 %47
    %v50 = vlaneseq
    %v51 = vshrl.u32 %v50, 7
    %v52 = vsub.s32 0, %v51
    %v53 = vrot.slane %v21, %v52
    %v54 = vmul.f32 %v33, %v53
    %v55 = vmul.f32 %v38, %v53
    %v56 = vmul.f32 %v43, %v53
    %v57 = vmul.f32 %v48, %v53
    %v58 = vadd.f32 %v22, %v54
    %v59 = vadd.f32 %v23, %v55
    %v60 = vadd.f32 %v24, %v56
    %v61 = vadd.f32 %v25, %v57
    %62 = vset.pattern.permute.xlu0 1
    %63 = vperm.xlu0 %62, %v26
    %v64 = vpop.permute.xlu0 %63
    %66 = vset.pattern.permute.xlu0 1
    %67 = vperm.xlu0 %66, %v27
    %v68 = vpop.permute.xlu0 %67
    %70 = vset.pattern.permute.xlu0 1
    %71 = vperm.xlu0 %70, %v28
    %v72 = vpop.permute.xlu0 %71
    %74 = vset.pattern.permute.xlu0 1
    %75 = vperm.xlu0 %74, %v29
    %v76 = vpop.permute.xlu0 %75
    %v78 = vlaneseq
    %v79 = vshrl.u32 %v78, 7
    %v80 = vsub.s32 1, %v79
    %v81 = vrot.slane %v21, %v80
    %v82 = vmul.f32 %v64, %v81
    %v83 = vmul.f32 %v68, %v81
    %v84 = vmul.f32 %v72, %v81
    %v85 = vmul.f32 %v76, %v81
    %v86 = vadd.f32 %v58, %v82
    %v87 = vadd.f32 %v59, %v83
    %v88 = vadd.f32 %v60, %v84
    %v89 = vadd.f32 %v61, %v85
    %90 = vset.pattern.permute.xlu0 2
    %91 = vperm.xlu0 %90, %v26
    %v92 = vpop.permute.xlu0 %91
    %94 = vset.pattern.permute.xlu0 2
    %95 = vperm.xlu0 %94, %v27
    %v96 = vpop.permute.xlu0 %95
    %98 = vset.pattern.permute.xlu0 2
    %99 = vperm.xlu0 %98, %v28
    %v100 = vpop.permute.xlu0 %99
    %102 = vset.pattern.permute.xlu0 2
    %103 = vperm.xlu0 %102, %v29
    %v104 = vpop.permute.xlu0 %103
    %v106 = vlaneseq
    %v107 = vshrl.u32 %v106, 7
    %v108 = vsub.s32 2, %v107
    %v109 = vrot.slane %v21, %v108
    %v110 = vmul.f32 %v92, %v109
    %v111 = vmul.f32 %v96, %v109
    %v112 = vmul.f32 %v100, %v109
    %v113 = vmul.f32 %v104, %v109
    %v114 = vadd.f32 %v86, %v110
    %v115 = vadd.f32 %v87, %v111
    %v116 = vadd.f32 %v88, %v112
    %v117 = vadd.f32 %v89, %v113
    %118 = vset.pattern.permute.xlu0 3
    %119 = vperm.xlu0 %118, %v26
    %v120 = vpop.permute.xlu0 %119
    %122 = vset.pattern.permute.xlu0 3
    %123 = vperm.xlu0 %122, %v27
    %v124 = vpop.permute.xlu0 %123
    %126 = vset.pattern.permute.xlu0 3
    %127 = vperm.xlu0 %126, %v28
    %v128 = vpop.permute.xlu0 %127
    %130 = vset.pattern.permute.xlu0 3
    %131 = vperm.xlu0 %130, %v29
    %v132 = vpop.permute.xlu0 %131
    %v134 = vlaneseq
    %v135 = vshrl.u32 %v134, 7
    %v136 = vsub.s32 3, %v135
    %v137 = vrot.slane %v21, %v136
    %v138 = vmul.f32 %v120, %v137
    %v139 = vmul.f32 %v124, %v137
    %v140 = vmul.f32 %v128, %v137
    %v141 = vmul.f32 %v132, %v137
    %v142 = vadd.f32 %v114, %v138
    %v143 = vadd.f32 %v115, %v139
    %v144 = vadd.f32 %v116, %v140
    %v145 = vadd.f32 %v117, %v141
    %v146 = vadd.f32 %v142, %v143
    %v147 = vadd.f32 %v146, %v144
    %v148 = vadd.f32 %v147, %v145
    %v149 = vrot.slane %v148, 4
    %v150 = vadd.f32 %v148, %v149
    %v151 = vrot.slane %v150, 2
    %v152 = vadd.f32 %v150, %v151
    %v153 = vrot.slane %v152, 1
    %v154 = vadd.f32 %v152, %v153
    %v155 = vmul.f32 %v154, 0.03125
    %v156 = vsub.f32 %v142, %v155
    %v157 = vsub.f32 %v143, %v155
    %v158 = vsub.f32 %v144, %v155
    %v159 = vsub.f32 %v145, %v155
    %v160 = vmul.f32 %v156, %v156
    %v161 = vmul.f32 %v157, %v157
    %v162 = vmul.f32 %v158, %v158
    %v163 = vmul.f32 %v159, %v159
    %v164 = vadd.f32 %v160, %v161
    %v165 = vadd.f32 %v164, %v162
    %v166 = vadd.f32 %v165, %v163
    %v167 = vrot.slane %v166, 4
    %v168 = vadd.f32 %v166, %v167
    %v169 = vrot.slane %v168, 2
    %v170 = vadd.f32 %v168, %v169
    %v171 = vrot.slane %v170, 1
    %v172 = vadd.f32 %v170, %v171
    %v173 = vmul.f32 %v172, 0.03125
    %v174 = vadd.f32 %v173, 1e-05
    %v175 = vrsqrt.pop %v174
    %v176 = vmul.f32 %v156, %v175
    %v177 = vmul.f32 %v157, %v175
    %v178 = vmul.f32 %v158, %v175
    %v179 = vmul.f32 %v159, %v175
    %v180 = vld [vmem:[%s3] sm:$0xff]
    %v181 = vld [vmem:[%s3 + $0x8] sm:$0xff]
    %v182 = vld [vmem:[%s3 + $0x10] sm:$0xff]
    %v183 = vld [vmem:[%s3 + $0x18] sm:$0xff]
    %185 = vset.pattern.permute.xlu0 0
    %186 = vperm.xlu0 %185, %v180
    %v187 = vpop.permute.xlu0 %186
    %190 = vset.pattern.permute.xlu0 0
    %191 = vperm.xlu0 %190, %v181
    %v192 = vpop.permute.xlu0 %191
    %195 = vset.pattern.permute.xlu0 0
    %196 = vperm.xlu0 %195, %v182
    %v197 = vpop.permute.xlu0 %196
    %200 = vset.pattern.permute.xlu0 0
    %201 = vperm.xlu0 %200, %v183
    %v202 = vpop.permute.xlu0 %201
    %v204 = vmul.f32 %v176, %v187
    %v205 = vmul.f32 %v177, %v192
    %v206 = vmul.f32 %v178, %v197
    %v207 = vmul.f32 %v179, %v202
    %v208 = vld [vmem:[%s4] sm:$0xff]
    %v209 = vld [vmem:[%s4 + $0x8] sm:$0xff]
    %v210 = vld [vmem:[%s4 + $0x10] sm:$0xff]
    %v211 = vld [vmem:[%s4 + $0x18] sm:$0xff]
    %213 = vset.pattern.permute.xlu0 0
    %214 = vperm.xlu0 %213, %v208
    %v215 = vpop.permute.xlu0 %214
    %218 = vset.pattern.permute.xlu0 0
    %219 = vperm.xlu0 %218, %v209
    %v220 = vpop.permute.xlu0 %219
    %223 = vset.pattern.permute.xlu0 0
    %224 = vperm.xlu0 %223, %v210
    %v225 = vpop.permute.xlu0 %224
    %228 = vset.pattern.permute.xlu0 0
    %229 = vperm.xlu0 %228, %v211
    %v230 = vpop.permute.xlu0 %229
    %v232 = vadd.f32 %v204, %v215
    %v233 = vadd.f32 %v205, %v220
    %v234 = vadd.f32 %v206, %v225
    %v235 = vadd.f32 %v207, %v230
    %236 = vst [vmem:[#allocation2] sm:$0xff] %v232
    %237 = vst [vmem:[#allocation2 + $0x8] sm:$0xff] %v233
    %238 = vst [vmem:[#allocation2 + $0x10] sm:$0xff] %v234
    %239 = vst [vmem:[#allocation2 + $0x18] sm:$0xff] %v235
    // Predicated region
    $region22: #{tpu_custom_call.1} parent=1 // pred_check
      _
    $region23: #{tpu_custom_call.1} parent=1 // pred_check_branch
      %241 = sbr.rel (0) target = $region25
    $region24: #{tpu_custom_call.1} parent=1 // pred_region
      %s243 = ssub.s32 512, 512
      %244 = vsyncadd [#allocation3], %s243
      %s245 = sshll.u32 [#allocation2], 4
      %s246 = int_to_ptr.vmem [resolvable:$true] %s245
      %251 = dma.vmem_to_hbm [thread:$0]  %s246, 512, %s5, [#allocation3], 128, 128, 8
    $region25: #{tpu_custom_call.1} parent=1 // pred_fallthru
      _
    // Predicated region
    $region26: #{tpu_custom_call.1} parent=1 // pred_check
      _
    $region27: #{tpu_custom_call.1} parent=1 // pred_check_branch
      %253 = sbr.rel (0) target = $region29
    $region28: #{tpu_custom_call.1} parent=1 // pred_region
      %254 = dma.done [#allocation3], 512
    $region29: #{tpu_custom_call.1} parent=1 // pred_fallthru
      _
    %255 = vsyncpa [#allocation3], 1

</llo_original>
